<compile_context>
chip_gen: v6e
topology: v6e:2x2x1
jax: 0.10.0
libtpu: 0.0.40
codegen_flags: <defaults>
</compile_context>

<pallas_src>
import functools
import math

import jax
import jax.numpy as jnp
from jax.experimental import pallas as pl
from jax.experimental.pallas import tpu as pltpu


# ----------------------------------------------------------------------------- helpers
def _round_up(x, m):
    return ((x + m - 1) // m) * m


def _full_spec(shape):
    nd = len(shape)
    return pl.BlockSpec(shape, lambda i, nd=nd: (0,) * nd)


@functools.lru_cache(maxsize=1)
def _roll_matches_jnp():
    """pltpu.roll is documented as jnp.roll-compatible; verify the sign convention once
    at runtime so the conv tap shifts are robust either way."""
    def k(x_ref, o_ref):
        o_ref[...] = pltpu.roll(x_ref[...], 3, 1)

    x = jnp.arange(8 * 128, dtype=jnp.float32).reshape(8, 128)
    out = pl.pallas_call(k, out_shape=jax.ShapeDtypeStruct((8, 128), jnp.float32))(x)
    return bool(jnp.array_equal(out, jnp.roll(x, 3, axis=1)))


_TAPS = tuple((ky - 1, kx - 1) for ky in range(3) for kx in range(3))


# ------------------------------------------------------------------- fused kernel body
def _build_kernel(*, H, W, b_tile, c_pad, c1_pad, n_agent, n_cond,
                  agent_relu, cond_relu, roll_like_jnp):
    HW = H * W
    NL = b_tile * HW

    def lane_shift(x, d):
        if d == 0:
            return x
        shift = ((-d) % NL) if roll_like_jnp else (d % NL)
        return pltpu.roll(x, shift, 1)

    def kernel(x_ref, s_ref, w1_ref, b1_ref, w2_ref, b2_ref, wf_ref, bf_ref, *rest):
        out_ref, im1_ref, im2_ref = rest[-3], rest[-2], rest[-1]
        prefs = rest[:-3]

        # ---- spatial validity masks (lane axis = flattened batch*H*W), built once per
        # grid step and reused for both convs.
        lane = jax.lax.broadcasted_iota(jnp.int32, (1, NL), 1)
        q = lane % HW
        row = q // W
        col = q % W
        row_ok = {-1: row > 0, 1: row < (H - 1)}
        col_ok = {-1: col > 0, 1: col < (W - 1)}

        def im2col(src, cpad, dst_ref):
            # 9 shifted taps written as full, sublane-aligned row blocks of the scratch.
            for t, (dy, dx) in enumerate(_TAPS):
                tap = lane_shift(src, dy * W + dx)
                mask = None
                if dy != 0:
                    mask = row_ok[dy]
                if dx != 0:
                    mask = col_ok[dx] if mask is None else (mask & col_ok[dx])
                if mask is not None:
                    tap = jnp.where(mask, tap, 0.0)
                dst_ref[t * cpad:(t + 1) * cpad, :] = tap

        def conv3x3_relu(dst_scratch, src, cpad, w_ref, b_ref):
            im2col(src, cpad, dst_scratch)
            z = jnp.dot(w_ref[...], dst_scratch[...],
                        preferred_element_type=jnp.float32)
            return jnp.maximum(z + b_ref[...], 0.0)

        h1 = conv3x3_relu(im1_ref, x_ref[...], c_pad, w1_ref, b1_ref)    # (c1_pad, NL)
        h2 = conv3x3_relu(im2_ref, h1, c1_pad, w2_ref, b2_ref)           # (c2_pad, NL)

        # ---- global average pool per image -> (b_tile, c2_pad)
        cols = [jnp.sum(h2[:, b * HW:(b + 1) * HW], axis=1, keepdims=True)
                for b in range(b_tile)]
        pooled = jnp.concatenate(cols, axis=1) * (1.0 / HW)              # (c2_pad, b_tile)
        pooled_t = jnp.transpose(pooled)                                 # (b_tile, c2_pad)

        map_feat = (jnp.dot(pooled_t, wf_ref[...],
                            preferred_element_type=jnp.float32) + bf_ref[...])

        # ---- fused head (BatchNorm already folded into w/b on the host)
        def dense(h, w_r, b_r, relu):
            z = jnp.dot(h, w_r[...], preferred_element_type=jnp.float32) + b_r[...]
            return jnp.maximum(z, 0.0) if relu else z

        h = s_ref[...]                                                   # (b_tile, d_state)
        idx = 0
        for li in range(n_agent):
            h = dense(h, prefs[idx], prefs[idx + 1], agent_relu[li])
            idx += 2

        # first cond layer: split weight replaces concat([state_feat, map_feat])
        w_s, w_m, b0 = prefs[idx], prefs[idx + 1], prefs[idx + 2]
        idx += 3
        z = (jnp.dot(h, w_s[...], preferred_element_type=jnp.float32)
             + jnp.dot(map_feat, w_m[...], preferred_element_type=jnp.float32)
             + b0[...])
        if cond_relu[0]:
            z = jnp.maximum(z, 0.0)
        for li in range(1, n_cond):
            z = dense(z, prefs[idx], prefs[idx + 1], cond_relu[li])
            idx += 2

        out_ref[...] = z.astype(out_ref.dtype)

    return kernel


# ------------------------------------------------------------------ host-side packing
def _fold_bn(layers):
    # h = (h@w + b)*s + t  ==  h@(w*s) + (b*s + t)
    return [(w * s, b * s + t, bool(r)) for (w, b, s, t, r) in layers]


def _pack_conv(w, b, cin_pad, cout_pad):
    # (3,3,cin,cout) -> (cout_pad, 9*cin_pad), tap-major then (zero-padded) channel.
    kh, kw, cin, cout = w.shape
    wt = jnp.transpose(w.reshape(kh * kw, cin, cout), (2, 0, 1))         # (cout, 9, cin)
    wp = jnp.zeros((cout_pad, kh * kw, cin_pad), jnp.float32)
    wp = wp.at[:cout, :, :cin].set(wt).reshape(cout_pad, kh * kw * cin_pad)
    bp = jnp.zeros((cout_pad, 1), jnp.float32).at[:cout, 0].set(b[0])
    return wp, bp


def fused_context_encoder(params, curr_states, image, *, b_tile=8):
    """image (N,C,H,W) + curr_states (N,S) -> cond_feat (N, D_cond); one pallas_call."""
    n, c, h, w_sp = image.shape
    hw = h * w_sp
    assert hw % 128 == 0, "H*W must be a multiple of 128 for lane-dense tiling"

    b_tile = b_tile if n >= b_tile else n
    n_pad = _round_up(n, b_tile)
    c_pad = _round_up(c, 8)

    # TODO(synk): original MapEncoder wraps a torchvision ResNet backbone; here it is a
    # conv3x3-ReLU x2 + global-average-pool + Linear head with the same I/O contract.
    w1, b1 = params["map_encoder"]["conv1"]
    w2, b2 = params["map_encoder"]["conv2"]
    wf, bf = params["map_encoder"]["fc"]
    c1, c2 = w1.shape[-1], w2.shape[-1]
    c1_pad, c2_pad = _round_up(c1, 8), _round_up(c2, 8)
    d_map = wf.shape[1]

    w1p, b1p = _pack_conv(w1, b1, c_pad, c1_pad)
    w2p, b2p = _pack_conv(w2, b2, c1_pad, c2_pad)
    wfp = jnp.zeros((c2_pad, d_map), jnp.float32).at[:c2].set(wf)

    agent = _fold_bn(params["agent_state_encoder"])
    cond = _fold_bn(params["process_cond_mlp"])
    d_state = curr_states.shape[1]
    d_feat = agent[-1][0].shape[1]
    d_out = cond[-1][0].shape[1]
    w0, b0, _ = cond[0]
    head_params = []
    for (wl, bl, _) in agent:
        head_params += [wl, bl]
    head_params += [w0[:d_feat], w0[d_feat:d_feat + d_map], b0]
    for (wl, bl, _) in cond[1:]:
        head_params += [wl, bl]

    # lane-dense image layout: (zero-padded) channels on sublanes, batch*H*W on lanes.
    x = image.astype(jnp.float32)
    x = jnp.pad(x, ((0, n_pad - n), (0, c_pad - c), (0, 0), (0, 0)))
    x = jnp.transpose(x, (1, 0, 2, 3)).reshape(c_pad, n_pad * hw)
    s = jnp.pad(curr_states.astype(jnp.float32), ((0, n_pad - n), (0, 0)))

    kernel = _build_kernel(
        H=h, W=w_sp, b_tile=b_tile, c_pad=c_pad, c1_pad=c1_pad,
        n_agent=len(agent), n_cond=len(cond),
        agent_relu=tuple(r for (_, _, r) in agent),
        cond_relu=tuple(r for (_, _, r) in cond),
        roll_like_jnp=_roll_matches_jnp())

    in_specs = [
        pl.BlockSpec((c_pad, b_tile * hw), lambda i: (0, i)),
        pl.BlockSpec((b_tile, d_state), lambda i: (i, 0)),
        _full_spec(w1p.shape), _full_spec(b1p.shape),
        _full_spec(w2p.shape), _full_spec(b2p.shape),
        _full_spec(wfp.shape), _full_spec(bf.shape),
    ] + [_full_spec(p.shape) for p in head_params]

    out = pl.pallas_call(
        kernel,
        out_shape=jax.ShapeDtypeStruct((n_pad, d_out), jnp.float32),
        grid=(n_pad // b_tile,),
        in_specs=in_specs,
        out_specs=pl.BlockSpec((b_tile, d_out), lambda i: (i, 0)),
        scratch_shapes=[
            pltpu.VMEM((9 * c_pad, b_tile * hw), jnp.float32),   # im2col for conv1
            pltpu.VMEM((9 * c1_pad, b_tile * hw), jnp.float32),  # im2col for conv2
        ],
        compiler_params=pltpu.CompilerParams(dimension_semantics=("parallel",)),
    )(x, s, w1p, b1p, w2p, b2p, wfp, bf, *head_params)
    return out[:n]


# --------------------------------------------------------------------------------- glue
def get_current_states(data_batch):
    # Glue mirroring batch_utils().get_current_states for Unicycle dynamics:
    # current state = [x, y, speed, yaw] at the most recent history step.
    pos = data_batch["history_positions"][:, -1, :]
    speed = data_batch["curr_speed"][:, None]
    yaw = data_batch["history_yaws"][:, -1, :]
    return jnp.concatenate([pos, speed, yaw], axis=-1)


def context_encoder_forward(params, data_batch):
    curr_states = get_current_states(data_batch)
    image = data_batch["image"]
    cond_feat = fused_context_encoder(params, curr_states, image)
    return {"cond_feat": cond_feat, "curr_states": curr_states, "image": image}


# -------------------------------------------------------------------------- param init
def init_linear(key, din, dout):
    kw, kb = jax.random.split(key)
    bound = 1.0 / math.sqrt(din)
    w = jax.random.uniform(kw, (din, dout), jnp.float32, -bound, bound)
    b = jax.random.uniform(kb, (1, dout), jnp.float32, -bound, bound)
    return w, b


def init_bn_folded(key, d, eps=1e-5):
    # TODO(synk): BatchNorm1d folded in eval mode (running stats); training-mode batch
    # statistics are not implemented.
    kg, kb, km, kv = jax.random.split(key, 4)
    gamma = 1.0 + 0.1 * jax.random.normal(kg, (d,), jnp.float32)
    beta = 0.1 * jax.random.normal(kb, (d,), jnp.float32)
    r_mean = 0.1 * jax.random.normal(km, (d,), jnp.float32)
    r_var = 1.0 + 0.1 * jax.random.uniform(kv, (d,), jnp.float32)
    scale = gamma / jnp.sqrt(r_var + eps)
    shift = beta - r_mean * scale
    return scale.reshape(1, d), shift.reshape(1, d)


def init_mlp_params(key, din, dout, layer_dims):
    layers = []
    dims = [din] + list(layer_dims)
    keys = jax.random.split(key, 2 * len(layer_dims) + 1)
    for i, l in enumerate(layer_dims):
        w, b = init_linear(keys[2 * i], dims[i], l)
        s, t = init_bn_folded(keys[2 * i + 1], l)
        layers.append((w, b, s, t, True))
    w, b = init_linear(keys[-1], dims[-1], dout)
    layers.append((w, b, jnp.ones((1, dout), jnp.float32),
                   jnp.zeros((1, dout), jnp.float32), False))
    return layers


def init_conv(key, cin, cout, k=3):
    kw, kb = jax.random.split(key)
    bound = 1.0 / math.sqrt(cin * k * k)
    w = jax.random.uniform(kw, (k, k, cin, cout), jnp.float32, -bound, bound)
    b = jax.random.uniform(kb, (1, cout), jnp.float32, -bound, bound)
    return w, b


def init_context_encoder_params(key, state_in_dim, curr_state_feat_dim, img_c,
                                map_feature_dim, cond_feat_dim):
    k1, k2, k3, k4, k5 = jax.random.split(key, 5)
    agent_state_encoder = init_mlp_params(
        k1, state_in_dim, curr_state_feat_dim,
        (curr_state_feat_dim, curr_state_feat_dim))
    map_encoder = {
        "conv1": init_conv(k2, img_c, 16),
        "conv2": init_conv(k3, 16, 32),
        "fc": init_linear(k4, 32, map_feature_dim),
    }
    cond_in = curr_state_feat_dim + map_feature_dim
    process_cond_mlp = init_mlp_params(
        k5, cond_in, cond_feat_dim,
        (cond_in, cond_in, cond_feat_dim, cond_feat_dim))
    return {"agent_state_encoder": agent_state_encoder,
            "map_encoder": map_encoder,
            "process_cond_mlp": process_cond_mlp}


# ---------------------------------------------------------------------- pure-JAX reference
def _mlp_ref(x, layers):
    h = x
    for (w, b, s, t, relu) in layers:
        h = (h @ w + b) * s + t
        if relu:
            h = jnp.maximum(h, 0.0)
    return h


def _im2col_3x3_ref(x_nhwc):
    n, h, w, c = x_nhwc.shape
    xp = jnp.pad(x_nhwc, ((0, 0), (1, 1), (1, 1), (0, 0)))
    taps = []
    for ky in range(3):
        for kx in range(3):
            taps.append(xp[:, ky:ky + h, kx:kx + w, :])
    patches = jnp.stack(taps, axis=3)
    return patches.reshape(n * h * w, 9 * c)


def reference_forward(params, data_batch):
    curr_states = get_current_states(data_batch)
    curr_state_feat = _mlp_ref(curr_states, params["agent_state_encoder"])
    x = jnp.transpose(data_batch["image"], (0, 2, 3, 1)).astype(jnp.float32)
    n, h, w, c = x.shape
    w1, b1 = params["map_encoder"]["conv1"]
    c1 = w1.shape[-1]
    h1 = jnp.maximum(_im2col_3x3_ref(x) @ w1.reshape(9 * c, c1) + b1, 0.0).reshape(n, h, w, c1)
    w2, b2 = params["map_encoder"]["conv2"]
    c2 = w2.shape[-1]
    h2 = jnp.maximum(_im2col_3x3_ref(h1) @ w2.reshape(9 * c1, c2) + b2, 0.0)
    g = jnp.mean(h2.reshape(n, h * w, c2), axis=1)
    wf, bf = params["map_encoder"]["fc"]
    map_feat = g @ wf + bf
    cond_in = jnp.concatenate([curr_state_feat, map_feat], axis=-1)
    return {"cond_feat": _mlp_ref(cond_in, params["process_cond_mlp"])}


# --------------------------------------------------------------------------------- main
def make_batch(key, n, t_hist=8, img_c=4, img_h=16, img_w=16):
    kd = jax.random.split(key, 4)
    return {
        "history_positions": jax.random.normal(kd[0], (n, t_hist, 2), jnp.float32),
        "history_yaws": 0.1 * jax.random.normal(kd[1], (n, t_hist, 1), jnp.float32),
        "curr_speed": jnp.abs(jax.random.normal(kd[2], (n,), jnp.float32)),
        "image": jax.random.uniform(kd[3], (n, img_c, img_h, img_w), jnp.float32),
    }


if __name__ == "__main__":
    N = 2
    STATE_IN_DIM = 4
    CURR_STATE_FEAT_DIM = 32
    MAP_FEATURE_DIM = 32
    COND_FEAT_DIM = 32
    IMG_C, IMG_H, IMG_W = 4, 16, 16

    key = jax.random.PRNGKey(0)
    k_params, k_data = jax.random.split(key)
    params = init_context_encoder_params(
        k_params, STATE_IN_DIM, CURR_STATE_FEAT_DIM, IMG_C, MAP_FEATURE_DIM, COND_FEAT_DIM)

    data_batch = make_batch(k_data, N, img_c=IMG_C, img_h=IMG_H, img_w=IMG_W)

    aux_info = context_encoder_forward(params, data_batch)
    cond_feat = jax.block_until_ready(aux_info["cond_feat"])

    assert cond_feat.shape == (N, COND_FEAT_DIM)
    assert aux_info["curr_states"].shape == (N, STATE_IN_DIM)
    assert aux_info["image"].shape == (N, IMG_C, IMG_H, IMG_W)
    assert bool(jnp.all(jnp.isfinite(cond_feat)))

    ref = reference_forward(params, data_batch)
    assert bool(jnp.allclose(cond_feat, ref["cond_feat"], rtol=1e-3, atol=1e-3)), (
        "Pallas output mismatch vs JAX reference (N=2)")

    # second check: batch large enough to exercise batch tiling, padding and a
    # multi-step "parallel" grid.
    data_batch2 = make_batch(jax.random.PRNGKey(1), 20, img_c=IMG_C, img_h=IMG_H, img_w=IMG_W)
    out2 = jax.block_until_ready(context_encoder_forward(params, data_batch2)["cond_feat"])
    ref2 = reference_forward(params, data_batch2)["cond_feat"]
    assert bool(jnp.allclose(out2, ref2, rtol=1e-3, atol=1e-3)), (
        "Pallas output mismatch vs JAX reference (N=20)")

    print("KERNEL_OK")
</pallas_src>

<mosaic_0001>
module attributes {stable_mosaic.version = 11 : i64} {
  func.func @k(%arg0: memref<8x128xf32, #tpu.memory_space<vmem>>, %arg1: memref<8x128xf32, #tpu.memory_space<vmem>>) attributes {dimension_semantics = [], scalar_prefetch = 0 : i64, scratch_operands = 0 : i64, tpu.core_type = #tpu.core_type<tc>} {
    %c0 = arith.constant 0 : index
    %c0_0 = arith.constant 0 : index
    %0 = vector.load %arg0[%c0, %c0_0] : memref<8x128xf32, #tpu.memory_space<vmem>>, vector<8x128xf32>
    %c3_i32 = arith.constant 3 : i32
    %1 = tpu.dynamic_rotate %0 by %c3_i32 dim 1 : vector<8x128xf32>, i32 -> vector<8x128xf32>
    %c0_1 = arith.constant 0 : index
    %c0_2 = arith.constant 0 : index
    %2 = vector.load %arg1[%c0_1, %c0_2] : memref<8x128xf32, #tpu.memory_space<vmem>>, vector<8x128xf32>
    tpu.vector_store %arg1[%c0_1, %c0_2], %1 {strides = array<i32>} : memref<8x128xf32, #tpu.memory_space<vmem>>, vector<8x128xf32>,
    return
  }
}

</mosaic_0001>

<llo_original>
// kernel: tpu_custom_call.1
$region0: #{tpu_custom_call.1}
  #allocation0 [shape = 'u32[]', space=smem, size = 0x4, offset = 0x4, fixed_abs, tag = 'smem constant byte address 0x4 - core index']
  #allocation1 [shape = 'u32[144,128]{1,0:T(1,128)}', space=vmem, size = 0x12000, scoped, tag = 'internal scratch']
  %s0 = inlined_call_operand.hbm [shape: f32[8,128], index: 0, kind: input, shape index: {}]
  %s1 = inlined_call_operand.hbm [shape: f32[8,128], index: 1, kind: output, shape index: {}]
  %s2 = sld [smem:[#allocation0]]
  $region18: #{tpu_custom_call.1} parent=0
    _
  %s4 = ssub.s32 1, %s2
  %s5 = scalar_select 0, %s4, %s2
  $region1: #{tpu_custom_call.1} parent=0
    #allocation2 [shape = 'u8[4096]{0}', space=vmem, size = 0x1000, scoped, tag = 'input window, operand 0, single buffered']
    #allocation3 [shape = 's32[1]{0}', space=sflag, size = 0x4, scoped, tag = 'scoped memory for tpu_custom_call.1']
    #allocation4 [shape = 's32[1]{0}', space=sflag, size = 0x4, scoped, tag = 'scoped memory for tpu_custom_call.1']
    #allocation5 [shape = 'u8[4096]{0}', space=vmem, size = 0x1000, scoped, tag = 'output window, operand 0, single buffered']
    %6 = vsyncpa [#allocation3], 0
    %7 = vsyncpa [#allocation4], 0
    // Predicated region
    $region2: #{tpu_custom_call.1} parent=1 // pred_check
      _
    $region3: #{tpu_custom_call.1} parent=1 // pred_check_branch
      %9 = sbr.rel (0) target = $region5
    $region4: #{tpu_custom_call.1} parent=1 // pred_region
      %s11 = ssub.s32 128, 128
      %12 = vsyncadd [#allocation3], %s11
      %s14 = sshll.u32 [#allocation2], 4
      %s15 = int_to_ptr.vmem [resolvable:$true] %s14
      %17 = dma.hbm_to_vmem [thread:$0]  %s0, 128, %s15, [#allocation3]
    $region5: #{tpu_custom_call.1} parent=1 // pred_fallthru
      _
    // Predicated region
    $region6: #{tpu_custom_call.1} parent=1 // pred_check
      _
    $region7: #{tpu_custom_call.1} parent=1 // pred_check_branch
      %19 = sbr.rel (0) target = $region9
    $region8: #{tpu_custom_call.1} parent=1 // pred_region
      %20 = dma.done [#allocation3], 128
    $region9: #{tpu_custom_call.1} parent=1 // pred_fallthru
      _
    %v21 = vld [vmem:[#allocation2] sm:$0xff]
    %22 = vrot.lane.b32.xlu0 %v21, 3
    %v23 = vpop.permute.xlu0 %22
    %24 = vst [vmem:[#allocation5] sm:$0xff] %v23
    // Predicated region
    $region10: #{tpu_custom_call.1} parent=1 // pred_check
      _
    $region11: #{tpu_custom_call.1} parent=1 // pred_check_branch
      %26 = sbr.rel (0) target = $region13
    $region12: #{tpu_custom_call.1} parent=1 // pred_region
      %s28 = ssub.s32 128, 128
      %29 = vsyncadd [#allocation4], %s28
      %s31 = sshll.u32 [#allocation5], 4
      %s32 = int_to_ptr.vmem [resolvable:$true] %s31
      %34 = dma.vmem_to_hbm [thread:$0]  %s32, 128, %s1, [#allocation4]
    $region13: #{tpu_custom_call.1} parent=1 // pred_fallthru
      _
    // Predicated region
    $region14: #{tpu_custom_call.1} parent=1 // pred_check
      _
    $region15: #{tpu_custom_call.1} parent=1 // pred_check_branch
      %36 = sbr.rel (0) target = $region17
    $region16: #{tpu_custom_call.1} parent=1 // pred_region
      %37 = dma.done [#allocation4], 128
    $region17: #{tpu_custom_call.1} parent=1 // pred_fallthru
      _
    %38 = vsyncpa [#allocation3], 1
    %39 = vsyncpa [#allocation4], 1

</llo_original>
